<compile_context>
chip_gen: v5e
topology: v5e:2x2
jax: 0.10.0
libtpu: 0.0.40
codegen_flags: <defaults>
</compile_context>

<pallas_src>
from functools import partial

import numpy as np
import jax
import jax.numpy as jnp
from jax.experimental import pallas as pl
from jax.experimental.pallas import tpu as pltpu


def _round_up(a, m):
    return (a + m - 1) // m * m


def _build_path_tables(max_depth, nodes_pad, leaves_pad):
    """Static heap-order path tables, laid out for ONE fused selection matmul.

    sel [nodes_pad, max_depth*leaves_pad]: column d*LP+L is one-hot at the
        depth-d node on the root->leaf-L path.
    dirs[1,         max_depth*leaves_pad]: 1.0 iff that path goes RIGHT at d.
    Padded node rows / padded leaf columns stay all-zero.
    """
    num_nodes = 2 ** max_depth - 1
    num_leaves = 2 ** max_depth
    sel = np.zeros((nodes_pad, max_depth * leaves_pad), np.float32)
    dirs = np.zeros((1, max_depth * leaves_pad), np.float32)
    for leaf in range(num_leaves):
        h = num_nodes + leaf                     # heap index of the leaf
        path = []
        while h != 0:
            parent = (h - 1) // 2
            path.append((parent, 1.0 if h == 2 * parent + 2 else 0.0))
            h = parent
        path.reverse()                           # root -> leaf, length max_depth
        for d, (node, went_right) in enumerate(path):
            sel[node, d * leaves_pad + leaf] = 1.0
            dirs[0, d * leaves_pad + leaf] = went_right
    return sel, dirs


def _ddt_kernel(max_depth, lp, x_ref, wt_ref, ab_ref, sel_ref, dir_ref,
                leaf_ref, out_ref):
    # All-node pre-activations in one MXU matmul.  W^T is pre-scaled by alpha
    # and ab = alpha*bias, so only a broadcast add + EUP sigmoid remain.
    x = x_ref[...]                                                   # [TB, K]
    z = jnp.dot(x, wt_ref[...], preferred_element_type=jnp.float32)  # [TB, NP]
    vals = jax.nn.sigmoid(z + ab_ref[...])                           # [TB, NP]

    # One fused selection matmul routes every (depth, leaf) path node.
    v_all = jnp.dot(vals, sel_ref[...],
                    preferred_element_type=jnp.float32)        # [TB, D*LP]
    dir_all = dir_ref[...]                                     # [1, D*LP]

    tb = x.shape[0]
    # Running product: chosen-branch probability if the row's decisions match
    # the leaf's path at every depth, else 0 (mask & mult fused).
    weights = jnp.ones((tb, lp), jnp.float32)
    for d in range(max_depth):                     # static, fully unrolled
        v_d = v_all[:, d * lp:(d + 1) * lp]        # 128-aligned lane slice
        path_right = dir_all[:, d * lp:(d + 1) * lp] > 0.5      # [1, LP]
        go_right = v_d >= 0.5                                   # [TB, LP]
        branch = jnp.where(path_right, v_d, 1.0 - v_d)
        weights = weights * jnp.where(go_right == path_right, branch, 0.0)

    # Exactly one real leaf per row survives with its path product; padded
    # leaves keep weight 1.0 but hit all-zero rows of leaf_ref (invariant:
    # the padded rows of leaf_ref must stay exactly zero).  Final combine
    # rides the MXU and produces a lane-dense [TB, OP] store.
    out_ref[...] = jnp.dot(weights, leaf_ref[...],
                           preferred_element_type=jnp.float32
                           ).astype(out_ref.dtype)


def ddt_prepare(W, alpha, bias, leaf_probs, max_depth):
    """One-time parameter prep (padding + folding alpha into W / bias).

    Call once per parameter set; keeps the per-forward hot path free of
    O(K*NP) / O(LP*OP) padding traffic.
    """
    num_nodes, num_input = W.shape
    num_leaves, num_output = leaf_probs.shape
    assert max_depth >= 1
    assert num_nodes == 2 ** max_depth - 1 and num_leaves == num_nodes + 1

    # Lane-dense padding: node / leaf / output axes -> multiples of 128.
    NP = _round_up(num_nodes, 128)
    LP = _round_up(num_leaves, 128)
    OP = _round_up(num_output, 128)

    f32 = jnp.float32
    alpha_r = jnp.reshape(alpha, (1, num_nodes)).astype(f32)
    bias_r = jnp.reshape(bias, (1, num_nodes)).astype(f32)
    # Fold alpha: sigmoid(alpha*(x.W + b)) == sigmoid(x.(alpha*W) + alpha*b).
    wt = jnp.zeros((num_input, NP), f32).at[:, :num_nodes].set(
        W.astype(f32).T * alpha_r)
    ab = jnp.zeros((1, NP), f32).at[:, :num_nodes].set(alpha_r * bias_r)
    leaf = jnp.zeros((LP, OP), f32).at[:num_leaves, :num_output].set(
        leaf_probs.astype(f32))

    sel_np, dir_np = _build_path_tables(max_depth, NP, LP)
    return dict(
        wt=wt, ab=ab, sel=jnp.asarray(sel_np), dirs=jnp.asarray(dir_np),
        leaf=leaf, NP=NP, LP=LP, OP=OP, max_depth=max_depth,
        num_input=num_input, num_output=num_output)


def ddt_forward(x, params):
    """Batched DDT forward.  x: [B, num_input] -> [B, num_output]."""
    NP, LP, OP = params["NP"], params["LP"], params["OP"]
    K, D = params["num_input"], params["max_depth"]
    num_output = params["num_output"]
    B = x.shape[0]
    assert x.shape[1] == K

    # Batch tile: as large as comfortably fits VMEM (amortizes the ~0.35 us
    # per-step pipeline overhead) but capped so the grid keeps >= 2 steps
    # whenever the batch allows it (v7x has 2 TensorCores per chip).
    BP8 = _round_up(B, 8)
    TB = min(512, BP8)
    if BP8 >= 16 and BP8 // TB < 2:
        TB = _round_up(BP8 // 2, 8)
    BP = _round_up(BP8, TB)
    grid = (BP // TB,)

    f32 = jnp.float32
    if BP == B:
        x_p = x.astype(f32)          # tile-aligned: no padded HBM copy of x
    else:
        x_p = jnp.zeros((BP, K), f32).at[:B].set(x.astype(f32))

    def invariant(shape):
        # Grid-invariant 2-D blocks: single-buffered (double-buffering them
        # only burns VMEM; sel grows as O(max_depth * 4^max_depth)).
        return pl.BlockSpec(shape, lambda i: (0, 0),
                            pipeline_mode=pl.Buffered(1))

    # Rough per-step VMEM footprint -> explicit limit with headroom.
    vmem_est = 4 * (2 * TB * K + 2 * TB * OP + K * NP + NP + NP * D * LP
                    + D * LP + LP * OP + TB * NP + TB * D * LP + TB * LP)
    vmem_limit = int(min(max(2 * vmem_est, 8 << 20), 64 << 20))

    out = pl.pallas_call(
        partial(_ddt_kernel, D, LP),
        out_shape=jax.ShapeDtypeStruct((BP, OP), f32),
        grid=grid,
        in_specs=[
            pl.BlockSpec((TB, K), lambda i: (i, 0)),   # x, blocked on batch
            invariant((K, NP)),                        # alpha-scaled W^T
            invariant((1, NP)),                        # alpha * bias
            invariant((NP, D * LP)),                   # fused path selection
            invariant((1, D * LP)),                    # path directions
            invariant((LP, OP)),                       # leaf prob dists
        ],
        out_specs=pl.BlockSpec((TB, OP), lambda i: (i, 0)),
        compiler_params=pltpu.CompilerParams(
            dimension_semantics=("parallel",),
            vmem_limit_bytes=vmem_limit),
    )(x_p, params["wt"], params["ab"], params["sel"], params["dirs"],
      params["leaf"])

    return out[:B, :num_output]


def ddt_reference(x, W, alpha, bias, leaf_probs, max_depth):
    """Vectorized pure-JAX mirror of the recursive PyTorch walk (per row).

    Uses default (MXU) dot precision to match the kernel's decision values.
    """
    num_nodes = W.shape[0]
    z = jnp.dot(x, W.T, preferred_element_type=jnp.float32)
    vals = jax.nn.sigmoid(alpha * (z + bias))                 # [B, num_nodes]
    B = x.shape[0]
    node = jnp.zeros((B,), jnp.int32)
    mult = jnp.ones((B,), jnp.float32)
    for _ in range(max_depth):
        v = jnp.take_along_axis(vals, node[:, None], axis=1)[:, 0]
        go_right = v >= 0.5
        mult = mult * jnp.where(go_right, v, 1.0 - v)
        node = 2 * node + jnp.where(go_right, 2, 1)
    leaf = node - num_nodes
    return mult[:, None] * leaf_probs[leaf]


def ddt_reference_recursive(x_row, W, alpha, bias, leaf_probs, max_depth):
    """Eager recursive oracle matching the PyTorch module line-for-line."""
    num_nodes = W.shape[0]

    def rec(node):
        if node >= num_nodes:                       # leaf
            return leaf_probs[node - num_nodes]
        val = jax.nn.sigmoid(
            alpha[0, node] * (jnp.dot(x_row, W[node]) + bias[0, node]))
        if float(val) >= 0.5:
            return val * rec(2 * node + 2)          # right child
        else:
            return (1.0 - val) * rec(2 * node + 1)  # left child

    return rec(0)


if __name__ == "__main__":
    # Small deterministic configuration (batch kept modest; exercises a
    # 2-step grid via the v7x tile-capping rule).
    num_input, num_output, max_depth = 32, 8, 3
    batch = 64
    num_nodes = 2 ** max_depth - 1
    num_leaves = 2 ** max_depth

    key = jax.random.PRNGKey(0)
    k_w, k_a, k_b, k_l, k_x = jax.random.split(key, 5)

    W = 0.1 * jax.random.normal(k_w, (num_nodes, num_input), jnp.float32)
    alpha = jax.random.normal(k_a, (1, num_nodes), jnp.float32)
    bias = 0.1 * jax.random.normal(k_b, (1, num_nodes), jnp.float32)
    leaf_probs = jax.random.normal(k_l, (num_leaves, num_output), jnp.float32)
    x = jax.random.normal(k_x, (batch, num_input), jnp.float32)

    params = ddt_prepare(W, alpha, bias, leaf_probs, max_depth)
    out = jax.block_until_ready(ddt_forward(x, params))
    ref = jax.block_until_ready(
        ddt_reference(x, W, alpha, bias, leaf_probs, max_depth))

    assert out.shape == (batch, num_output)
    assert jnp.allclose(out, ref, atol=1e-5, rtol=1e-5), (out[:2], ref[:2])

    # Spot-check a few rows against the exact recursive (PyTorch-shaped) oracle.
    for r in range(4):
        rref = ddt_reference_recursive(x[r], W, alpha, bias, leaf_probs,
                                       max_depth)
        assert jnp.allclose(out[r], rref, atol=1e-5, rtol=1e-5), (r, out[r], rref)

    print("KERNEL_OK")
</pallas_src>

<mosaic_0001>
module attributes {stable_mosaic.version = 11 : i64} {
  func.func @_ddt_kernel(%arg0: i32, %arg1: memref<32x32xf32, #tpu.memory_space<vmem>>, %arg2: memref<32x128xf32, #tpu.memory_space<vmem>>, %arg3: memref<1x128xf32, #tpu.memory_space<vmem>>, %arg4: memref<128x384xf32, #tpu.memory_space<vmem>>, %arg5: memref<1x384xf32, #tpu.memory_space<vmem>>, %arg6: memref<128x128xf32, #tpu.memory_space<vmem>>, %arg7: memref<32x128xf32, #tpu.memory_space<vmem>>) attributes {dimension_semantics = [#tpu.dimension_semantics<parallel>], iteration_bounds = array<i64: 2>, scalar_prefetch = 0 : i64, scratch_operands = 0 : i64, tpu.core_type = #tpu.core_type<tc>, window_params = [{transform_indices = @transform_0, window_bounds = array<i64: 32, 32>}, {pipeline_mode = #tpu.pipeline_mode<synchronous>, transform_indices = @transform_1, window_bounds = array<i64: 32, 128>}, {pipeline_mode = #tpu.pipeline_mode<synchronous>, transform_indices = @transform_2, window_bounds = array<i64: 1, 128>}, {pipeline_mode = #tpu.pipeline_mode<synchronous>, transform_indices = @transform_3, window_bounds = array<i64: 128, 384>}, {pipeline_mode = #tpu.pipeline_mode<synchronous>, transform_indices = @transform_4, window_bounds = array<i64: 1, 384>}, {pipeline_mode = #tpu.pipeline_mode<synchronous>, transform_indices = @transform_5, window_bounds = array<i64: 128, 128>}, {transform_indices = @transform_6, window_bounds = array<i64: 32, 128>}]} {
    %c0 = arith.constant 0 : index
    %c0_0 = arith.constant 0 : index
    %0 = vector.load %arg1[%c0, %c0_0] : memref<32x32xf32, #tpu.memory_space<vmem>>, vector<32x32xf32>
    %c0_1 = arith.constant 0 : index
    %c0_2 = arith.constant 0 : index
    %1 = vector.load %arg2[%c0_1, %c0_2] : memref<32x128xf32, #tpu.memory_space<vmem>>, vector<32x128xf32>
    %cst = arith.constant dense<0.000000e+00> : vector<32x128xf32>
    %2 = tpu.matmul %0, %1, %cst {dimension_numbers = #tpu.dot_dimension_numbers<[1], [0], [0], [1], [0, 0, 1, 1], [], []>} : vector<32x32xf32>, vector<32x128xf32>, vector<32x128xf32> -> vector<32x128xf32>
    %c0_3 = arith.constant 0 : index
    %c0_4 = arith.constant 0 : index
    %3 = vector.load %arg3[%c0_3, %c0_4] : memref<1x128xf32, #tpu.memory_space<vmem>>, vector<1x128xf32>
    %4 = vector.broadcast %3 : vector<1x128xf32> to vector<32x128xf32>
    %5 = arith.addf %2, %4 : vector<32x128xf32>
    %6 = arith.negf %5 : vector<32x128xf32>
    %7 = math.exp %6 : vector<32x128xf32>
    %cst_5 = arith.constant 1.000000e+00 : f32
    %8 = vector.broadcast %cst_5 : f32 to vector<32x128xf32>
    %9 = arith.addf %8, %7 : vector<32x128xf32>
    %10 = arith.divf %8, %9 : vector<32x128xf32>
    %c0_6 = arith.constant 0 : index
    %c0_7 = arith.constant 0 : index
    %11 = vector.load %arg4[%c0_6, %c0_7] : memref<128x384xf32, #tpu.memory_space<vmem>>, vector<128x384xf32>
    %cst_8 = arith.constant dense<0.000000e+00> : vector<32x384xf32>
    %12 = tpu.matmul %10, %11, %cst_8 {dimension_numbers = #tpu.dot_dimension_numbers<[1], [0], [0], [1], [0, 0, 1, 1], [], []>} : vector<32x128xf32>, vector<128x384xf32>, vector<32x384xf32> -> vector<32x384xf32>
    %c0_9 = arith.constant 0 : index
    %c0_10 = arith.constant 0 : index
    %13 = vector.load %arg5[%c0_9, %c0_10] : memref<1x384xf32, #tpu.memory_space<vmem>>, vector<1x384xf32>
    %cst_11 = arith.constant 1.000000e+00 : f32
    %14 = vector.broadcast %cst_11 : f32 to vector<32x128xf32>
    %15 = vector.extract_strided_slice %12 {offsets = [0, 0], sizes = [32, 128], strides = [1, 1]} : vector<32x384xf32> to vector<32x128xf32>
    %16 = vector.extract_strided_slice %13 {offsets = [0, 0], sizes = [1, 128], strides = [1, 1]} : vector<1x384xf32> to vector<1x128xf32>
    %cst_12 = arith.constant 5.000000e-01 : f32
    %17 = vector.broadcast %cst_12 : f32 to vector<1x128xf32>
    %18 = arith.cmpf ogt, %16, %17 : vector<1x128xf32>
    %cst_13 = arith.constant 5.000000e-01 : f32
    %19 = vector.broadcast %cst_13 : f32 to vector<32x128xf32>
    %20 = arith.cmpf oge, %15, %19 : vector<32x128xf32>
    %cst_14 = arith.constant 1.000000e+00 : f32
    %21 = vector.broadcast %cst_14 : f32 to vector<32x128xf32>
    %22 = arith.subf %21, %15 : vector<32x128xf32>
    %23 = vector.shape_cast %18 : vector<1x128xi1> to vector<1x128xi1>
    %24 = vector.broadcast %23 : vector<1x128xi1> to vector<32x128xi1>
    %25 = arith.select %24, %15, %22 : vector<32x128xi1>, vector<32x128xf32>
    %26 = vector.broadcast %18 : vector<1x128xi1> to vector<32x128xi1>
    %27 = vector.broadcast %26 : vector<32x128xi1> to vector<32x128xi1>
    %28 = arith.xori %20, %27 : vector<32x128xi1>
    %cst_15 = arith.constant dense<true> : vector<32x128xi1>
    %29 = arith.xori %28, %cst_15 : vector<32x128xi1>
    %cst_16 = arith.constant 0.000000e+00 : f32
    %30 = vector.broadcast %cst_16 : f32 to vector<32x128xf32>
    %31 = arith.select %29, %25, %30 : vector<32x128xi1>, vector<32x128xf32>
    %32 = arith.mulf %14, %31 : vector<32x128xf32>
    %33 = vector.extract_strided_slice %12 {offsets = [0, 128], sizes = [32, 128], strides = [1, 1]} : vector<32x384xf32> to vector<32x128xf32>
    %34 = vector.extract_strided_slice %13 {offsets = [0, 128], sizes = [1, 128], strides = [1, 1]} : vector<1x384xf32> to vector<1x128xf32>
    %cst_17 = arith.constant 5.000000e-01 : f32
    %35 = vector.broadcast %cst_17 : f32 to vector<1x128xf32>
    %36 = arith.cmpf ogt, %34, %35 : vector<1x128xf32>
    %cst_18 = arith.constant 5.000000e-01 : f32
    %37 = vector.broadcast %cst_18 : f32 to vector<32x128xf32>
    %38 = arith.cmpf oge, %33, %37 : vector<32x128xf32>
    %cst_19 = arith.constant 1.000000e+00 : f32
    %39 = vector.broadcast %cst_19 : f32 to vector<32x128xf32>
    %40 = arith.subf %39, %33 : vector<32x128xf32>
    %41 = vector.shape_cast %36 : vector<1x128xi1> to vector<1x128xi1>
    %42 = vector.broadcast %41 : vector<1x128xi1> to vector<32x128xi1>
    %43 = arith.select %42, %33, %40 : vector<32x128xi1>, vector<32x128xf32>
    %44 = vector.broadcast %36 : vector<1x128xi1> to vector<32x128xi1>
    %45 = vector.broadcast %44 : vector<32x128xi1> to vector<32x128xi1>
    %46 = arith.xori %38, %45 : vector<32x128xi1>
    %cst_20 = arith.constant dense<true> : vector<32x128xi1>
    %47 = arith.xori %46, %cst_20 : vector<32x128xi1>
    %cst_21 = arith.constant 0.000000e+00 : f32
    %48 = vector.broadcast %cst_21 : f32 to vector<32x128xf32>
    %49 = arith.select %47, %43, %48 : vector<32x128xi1>, vector<32x128xf32>
    %50 = arith.mulf %32, %49 : vector<32x128xf32>
    %51 = vector.extract_strided_slice %12 {offsets = [0, 256], sizes = [32, 128], strides = [1, 1]} : vector<32x384xf32> to vector<32x128xf32>
    %52 = vector.extract_strided_slice %13 {offsets = [0, 256], sizes = [1, 128], strides = [1, 1]} : vector<1x384xf32> to vector<1x128xf32>
    %cst_22 = arith.constant 5.000000e-01 : f32
    %53 = vector.broadcast %cst_22 : f32 to vector<1x128xf32>
    %54 = arith.cmpf ogt, %52, %53 : vector<1x128xf32>
    %cst_23 = arith.constant 5.000000e-01 : f32
    %55 = vector.broadcast %cst_23 : f32 to vector<32x128xf32>
    %56 = arith.cmpf oge, %51, %55 : vector<32x128xf32>
    %cst_24 = arith.constant 1.000000e+00 : f32
    %57 = vector.broadcast %cst_24 : f32 to vector<32x128xf32>
    %58 = arith.subf %57, %51 : vector<32x128xf32>
    %59 = vector.shape_cast %54 : vector<1x128xi1> to vector<1x128xi1>
    %60 = vector.broadcast %59 : vector<1x128xi1> to vector<32x128xi1>
    %61 = arith.select %60, %51, %58 : vector<32x128xi1>, vector<32x128xf32>
    %62 = vector.broadcast %54 : vector<1x128xi1> to vector<32x128xi1>
    %63 = vector.broadcast %62 : vector<32x128xi1> to vector<32x128xi1>
    %64 = arith.xori %56, %63 : vector<32x128xi1>
    %cst_25 = arith.constant dense<true> : vector<32x128xi1>
    %65 = arith.xori %64, %cst_25 : vector<32x128xi1>
    %cst_26 = arith.constant 0.000000e+00 : f32
    %66 = vector.broadcast %cst_26 : f32 to vector<32x128xf32>
    %67 = arith.select %65, %61, %66 : vector<32x128xi1>, vector<32x128xf32>
    %68 = arith.mulf %50, %67 : vector<32x128xf32>
    %c0_27 = arith.constant 0 : index
    %c0_28 = arith.constant 0 : index
    %69 = vector.load %arg6[%c0_27, %c0_28] : memref<128x128xf32, #tpu.memory_space<vmem>>, vector<128x128xf32>
    %cst_29 = arith.constant dense<0.000000e+00> : vector<32x128xf32>
    %70 = tpu.matmul %68, %69, %cst_29 {dimension_numbers = #tpu.dot_dimension_numbers<[1], [0], [0], [1], [0, 0, 1, 1], [], []>} : vector<32x128xf32>, vector<128x128xf32>, vector<32x128xf32> -> vector<32x128xf32>
    %c0_30 = arith.constant 0 : index
    %c0_31 = arith.constant 0 : index
    %71 = vector.load %arg7[%c0_30, %c0_31] : memref<32x128xf32, #tpu.memory_space<vmem>>, vector<32x128xf32>
    tpu.vector_store %arg7[%c0_30, %c0_31], %70 {strides = array<i32>} : memref<32x128xf32, #tpu.memory_space<vmem>>, vector<32x128xf32>,
    return
  }
  func.func @transform_0(%arg0: i32) -> (i32, i32) {
    %c0_i32 = arith.constant 0 : i32
    %c0_i32_0 = arith.constant 0 : i32
    return %arg0, %c0_i32 : i32, i32
  }
  func.func @transform_1(%arg0: i32) -> (i32, i32) {
    %c0_i32 = arith.constant 0 : i32
    %c0_i32_0 = arith.constant 0 : i32
    %c0_i32_1 = arith.constant 0 : i32
    return %c0_i32, %c0_i32_0 : i32, i32
  }
  func.func @transform_2(%arg0: i32) -> (i32, i32) {
    %c0_i32 = arith.constant 0 : i32
    %c0_i32_0 = arith.constant 0 : i32
    %c0_i32_1 = arith.constant 0 : i32
    return %c0_i32, %c0_i32_0 : i32, i32
  }
  func.func @transform_3(%arg0: i32) -> (i32, i32) {
    %c0_i32 = arith.constant 0 : i32
    %c0_i32_0 = arith.constant 0 : i32
    %c0_i32_1 = arith.constant 0 : i32
    return %c0_i32, %c0_i32_0 : i32, i32
  }
  func.func @transform_4(%arg0: i32) -> (i32, i32) {
    %c0_i32 = arith.constant 0 : i32
    %c0_i32_0 = arith.constant 0 : i32
    %c0_i32_1 = arith.constant 0 : i32
    return %c0_i32, %c0_i32_0 : i32, i32
  }
  func.func @transform_5(%arg0: i32) -> (i32, i32) {
    %c0_i32 = arith.constant 0 : i32
    %c0_i32_0 = arith.constant 0 : i32
    %c0_i32_1 = arith.constant 0 : i32
    return %c0_i32, %c0_i32_0 : i32, i32
  }
  func.func @transform_6(%arg0: i32) -> (i32, i32) {
    %c0_i32 = arith.constant 0 : i32
    %c0_i32_0 = arith.constant 0 : i32
    return %arg0, %c0_i32 : i32, i32
  }
}

</mosaic_0001>

<llo_original>
// kernel: tpu_custom_call.1
$region0: #{tpu_custom_call.1}
  #allocation0 [shape = 'u32[]', space=smem, size = 0x4, offset = 0x4, fixed_abs, tag = 'smem constant byte address 0x4 - core index']
  #allocation1 [shape = 'u32[72,128]{1,0:T(1,128)}', space=vmem, size = 0x9000, scoped, tag = 'internal scratch']
  %s0 = inlined_call_operand.vmem [shape: f32[64,32], index: 0, kind: input, shape index: {}]
  %s1 = inlined_call_operand.vmem [shape: f32[32,128], index: 1, kind: input, shape index: {}]
  %s2 = inlined_call_operand.vmem [shape: f32[1,128], index: 2, kind: input, shape index: {}]
  %s3 = inlined_call_operand.hbm [shape: f32[128,384], index: 3, kind: input, shape index: {}]
  %s4 = inlined_call_operand.vmem [shape: f32[1,384], index: 4, kind: input, shape index: {}]
  %s5 = inlined_call_operand.hbm [shape: f32[128,128], index: 5, kind: input, shape index: {}]
  %s6 = inlined_call_operand.hbm [shape: f32[64,128], index: 6, kind: output, shape index: {}]
  %s7 = sld [smem:[#allocation0]]
  $region65: #{tpu_custom_call.1} parent=0
    _
  %s9 = ssub.s32 1, %s7
  %s10 = scalar_select 0, %s9, %s7
  $region1: #{tpu_custom_call.1} parent=0
    #allocation2 [shape = 'u8[196608]{0}', space=vmem, size = 0x30000, scoped, tag = 'input window, operand 3, single buffered']
    #allocation3 [shape = 's32[2]{0}', space=sflag, size = 0x8, scoped, tag = 'scoped memory for tpu_custom_call.1']
    #allocation4 [shape = 's32[2]{0}', space=sflag, size = 0x8, scoped, tag = 'scoped memory for tpu_custom_call.1']
    #allocation5 [shape = 'u8[65536]{0}', space=vmem, size = 0x10000, scoped, tag = 'input window, operand 5, single buffered']
    #allocation6 [shape = 's32[1]{0}', space=sflag, size = 0x4, scoped, tag = 'scoped memory for tpu_custom_call.1']
    #allocation7 [shape = 'u8[32768]{0}', space=vmem, size = 0x8000, scoped, tag = 'output window, operand 0']
    %11 = vsyncpa [#allocation3], 0
    %12 = vsyncpa [#allocation6], 0
    %13 = vsyncpa [#allocation4], 0
    %s14 = scalar_lea.sflag [#allocation4], 1
    %15 = vsyncpa %s14, 0
    loop: start=0, step=1, limit=4
    $region2: #{tpu_custom_call.1} parent=1 // loop_pre_header
      _
    $region3: #{tpu_custom_call.1} parent=1 // loop_header
      %s17 = sphi 0, %s21
      %p18 = scmp.ge.s32.totalorder %s17, 4
      %s27 = sphi 0, %s29
      %s30 = sphi 0, %s27
      %s31 = sphi 0, %s30
      %s47 = sphi 0, %s31
      %s51 = sphi 0, %s51
      %s53 = sphi 0, %s51
      %s54 = sphi 0, %s53
      %s68 = sphi 0, %s54
      %s72 = sphi 0, %s72
      %s74 = sphi 0, %s72
      %s75 = sphi 0, %s74
      %s89 = sphi 0, %s75
      %s93 = sphi 0, %s93
      %s95 = sphi 0, %s93
      %s96 = sphi 0, %s95
      %s110 = sphi 0, %s96
      %s114 = sphi 0, %s114
      %s116 = sphi 0, %s114
      %s117 = sphi 0, %s116
      %s131 = sphi 0, %s117
      %s135 = sphi 0, %s135
      %s137 = sphi 0, %s135
      %s138 = sphi 0, %s137
      %s152 = sphi 0, %s138
      %s158 = sphi 0, %s160
      %s161 = sphi 0, %s158
      %s162 = sphi 0, %s161
      %s178 = sphi 0, %s162
    $region4: #{tpu_custom_call.1} parent=1 // loop_header_branch
      %20 = sbr.rel (%p18) target = $region8
    $region5: #{tpu_custom_call.1} parent=1 // loop_body
      %s22 = ssub.s32 %s17, 1
      %s23 = ssub.s32 %s17, 2
      %s24 = sadd.s32 %s17, 1
      %s25 = ssub.s32 %s17, %s24
      %p26 = scmp.eq.s32.totalorder %s25, 0
      %s28 = sadd.s32 %s27, 1
      %s29 = scalar_select %p26, %s27, %s28
      %p32 = pneg %p26
      %p33 = scmp.eq.s32.totalorder %s17, 1
      %p34 = por %p32, %p33
      %p35 = scmp.ne.s32.totalorder %s27, %s30
      %p36 = scmp.eq.s32.totalorder %s17, 0
      %p37 = por %p35, %p36
      %p38 = scmp.ne.s32.totalorder %s27, %s30
      %p39 = scmp.eq.s32.totalorder %s22, 1
      %p40 = por %p38, %p39
      %p41 = scmp.ne.s32.totalorder %s30, %s31
      %p42 = scmp.eq.s32.totalorder %s22, 0
      %p43 = por %p41, %p42
      %p44 = scmp.ne.s32.totalorder %s30, %s31
      %p45 = scmp.eq.s32.totalorder %s23, 1
      %p46 = por %p44, %p45
      %p48 = scmp.ne.s32.totalorder %s31, %s47
      %p49 = scmp.eq.s32.totalorder %s23, 0
      %p50 = por %p48, %p49
      %s52 = sadd.s32 %s51, 1
      %p55 = scmp.eq.s32.totalorder %s17, 1
      %p56 = scmp.ne.s32.totalorder %s51, %s53
      %p57 = scmp.eq.s32.totalorder %s17, 0
      %p58 = por %p56, %p57
      %p59 = scmp.ne.s32.totalorder %s51, %s53
      %p60 = scmp.eq.s32.totalorder %s22, 1
      %p61 = por %p59, %p60
      %p62 = scmp.ne.s32.totalorder %s53, %s54
      %p63 = scmp.eq.s32.totalorder %s22, 0
      %p64 = por %p62, %p63
      %p65 = scmp.ne.s32.totalorder %s53, %s54
      %p66 = scmp.eq.s32.totalorder %s23, 1
      %p67 = por %p65, %p66
      %p69 = scmp.ne.s32.totalorder %s54, %s68
      %p70 = scmp.eq.s32.totalorder %s23, 0
      %p71 = por %p69, %p70
      %s73 = sadd.s32 %s72, 1
      %p76 = scmp.eq.s32.totalorder %s17, 1
      %p77 = scmp.ne.s32.totalorder %s72, %s74
      %p78 = scmp.eq.s32.totalorder %s17, 0
      %p79 = por %p77, %p78
      %p80 = scmp.ne.s32.totalorder %s72, %s74
      %p81 = scmp.eq.s32.totalorder %s22, 1
      %p82 = por %p80, %p81
      %p83 = scmp.ne.s32.totalorder %s74, %s75
      %p84 = scmp.eq.s32.totalorder %s22, 0
      %p85 = por %p83, %p84
      %p86 = scmp.ne.s32.totalorder %s74, %s75
      %p87 = scmp.eq.s32.totalorder %s23, 1
      %p88 = por %p86, %p87
      %p90 = scmp.ne.s32.totalorder %s75, %s89
      %p91 = scmp.eq.s32.totalorder %s23, 0
      %p92 = por %p90, %p91
      %s94 = sadd.s32 %s93, 1
      %p97 = scmp.eq.s32.totalorder %s17, 1
      %p98 = scmp.ne.s32.totalorder %s93, %s95
      %p99 = scmp.eq.s32.totalorder %s17, 0
      %p100 = por %p98, %p99
      %p101 = scmp.ne.s32.totalorder %s93, %s95
      %p102 = scmp.eq.s32.totalorder %s22, 1
      %p103 = por %p101, %p102
      %p104 = scmp.ne.s32.totalorder %s95, %s96
      %p105 = scmp.eq.s32.totalorder %s22, 0
      %p106 = por %p104, %p105
      %p107 = scmp.ne.s32.totalorder %s95, %s96
      %p108 = scmp.eq.s32.totalorder %s23, 1
      %p109 = por %p107, %p108
      %p111 = scmp.ne.s32.totalorder %s96, %s110
      %p112 = scmp.eq.s32.totalorder %s23, 0
      %p113 = por %p111, %p112
      %s115 = sadd.s32 %s114, 1
      %p118 = scmp.eq.s32.totalorder %s17, 1
      %p119 = scmp.ne.s32.totalorder %s114, %s116
      %p120 = scmp.eq.s32.totalorder %s17, 0
      %p121 = por %p119, %p120
      %p122 = scmp.ne.s32.totalorder %s114, %s116
      %p123 = scmp.eq.s32.totalorder %s22, 1
      %p124 = por %p122, %p123
      %p125 = scmp.ne.s32.totalorder %s116, %s117
      %p126 = scmp.eq.s32.totalorder %s22, 0
      %p127 = por %p125, %p126
      %p128 = scmp.ne.s32.totalorder %s116, %s117
      %p129 = scmp.eq.s32.totalorder %s23, 1
      %p130 = por %p128, %p129
      %p132 = scmp.ne.s32.totalorder %s117, %s131
      %p133 = scmp.eq.s32.totalorder %s23, 0
      %p134 = por %p132, %p133
      %s136 = sadd.s32 %s135, 1
      %p139 = scmp.eq.s32.totalorder %s17, 1
      %p140 = scmp.ne.s32.totalorder %s135, %s137
      %p141 = scmp.eq.s32.totalorder %s17, 0
      %p142 = por %p140, %p141
      %p143 = scmp.ne.s32.totalorder %s135, %s137
      %p144 = scmp.eq.s32.totalorder %s22, 1
      %p145 = por %p143, %p144
      %p146 = scmp.ne.s32.totalorder %s137, %s138
      %p147 = scmp.eq.s32.totalorder %s22, 0
      %p148 = por %p146, %p147
      %p149 = scmp.ne.s32.totalorder %s137, %s138
      %p150 = scmp.eq.s32.totalorder %s23, 1
      %p151 = por %p149, %p150
      %p153 = scmp.ne.s32.totalorder %s138, %s152
      %p154 = scmp.eq.s32.totalorder %s23, 0
      %p155 = por %p153, %p154
      %s156 = ssub.s32 %s17, %s24
      %p157 = scmp.eq.s32.totalorder %s156, 0
      %s159 = sadd.s32 %s158, 1
      %s160 = scalar_select %p157, %s158, %s159
      %p163 = pneg %p157
      %p164 = scmp.eq.s32.totalorder %s17, 1
      %p165 = por %p163, %p164
      %p166 = scmp.ne.s32.totalorder %s158, %s161
      %p167 = scmp.eq.s32.totalorder %s17, 0
      %p168 = por %p166, %p167
      %p169 = scmp.ne.s32.totalorder %s158, %s161
      %p170 = scmp.eq.s32.totalorder %s22, 1
      %p171 = por %p169, %p170
      %p172 = scmp.ne.s32.totalorder %s161, %s162
      %p173 = scmp.eq.s32.totalorder %s22, 0
      %p174 = por %p172, %p173
      %p175 = scmp.ne.s32.totalorder %s161, %s162
      %p176 = scmp.eq.s32.totalorder %s23, 1
      %p177 = por %p175, %p176
      %p179 = scmp.ne.s32.totalorder %s162, %s178
      %p180 = scmp.eq.s32.totalorder %s23, 0
      %p181 = por %p179, %p180
      %p182 = scmp.le.s32.totalorder 1, %s17
      %p183 = scmp.lt.s32.totalorder %s17, 3
      %p184 = pnand %p182, %p183
      %p185 = pneg %p184
      // Predicated region
      $region9: #{tpu_custom_call.1} parent=5 // pred_check
        _
      $region10: #{tpu_custom_call.1} parent=5 // pred_check_branch
        %187 = sbr.rel (%p184) target = $region12
      $region11: #{tpu_custom_call.1} parent=5 // pred_region
        %s188 = ssub.s32 %s17, 1
        // Predicated region
        $region13: #{tpu_custom_call.1} parent=11 // pred_check
          %p189 = pneg %p64
        $region14: #{tpu_custom_call.1} parent=11 // pred_check_branch
          %191 = sbr.rel (%p189) target = $region16
        $region15: #{tpu_custom_call.1} parent=11 // pred_region
          _
        $region16: #{tpu_custom_call.1} parent=11 // pred_fallthru
          _
        // Predicated region
        $region17: #{tpu_custom_call.1} parent=11 // pred_check
          %p192 = pneg %p85
        $region18: #{tpu_custom_call.1} parent=11 // pred_check_branch
          %194 = sbr.rel (%p192) target = $region20
        $region19: #{tpu_custom_call.1} parent=11 // pred_region
          _
        $region20: #{tpu_custom_call.1} parent=11 // pred_fallthru
          _
        // Predicated region
        $region21: #{tpu_custom_call.1} parent=11 // pred_check
          %p195 = pneg %p106
        $region22: #{tpu_custom_call.1} parent=11 // pred_check_branch
          %197 = sbr.rel (%p195) target = $region24
        $region23: #{tpu_custom_call.1} parent=11 // pred_region
          %199 = vsyncadd [#allocation3], 0
          %s200 = sshll.u32 %s3, 4
          %s201 = int_to_ptr.hbm [resolvable:$true] %s200
          %s202 = sshll.u32 [#allocation2], 4
          %s203 = int_to_ptr.vmem [resolvable:$true] %s202
          %208 = dma.hbm_to_vmem [thread:$0]  %s201, 6144, %s203, [#allocation3], 384, 384, 24
        $region24: #{tpu_custom_call.1} parent=11 // pred_fallthru
          _
        // Predicated region
        $region25: #{tpu_custom_call.1} parent=11 // pred_check
          %p209 = pneg %p127
        $region26: #{tpu_custom_call.1} parent=11 // pred_check_branch
          %211 = sbr.rel (%p209) target = $region28
        $region27: #{tpu_custom_call.1} parent=11 // pred_region
          _
        $region28: #{tpu_custom_call.1} parent=11 // pred_fallthru
          _
        // Predicated region
        $region29: #{tpu_custom_call.1} parent=11 // pred_check
          %p212 = pneg %p148
        $region30: #{tpu_custom_call.1} parent=11 // pred_check_branch
          %214 = sbr.rel (%p212) target = $region32
        $region31: #{tpu_custom_call.1} parent=11 // pred_region
          %216 = vsyncadd [#allocation6], 0
          %s217 = sshll.u32 %s5, 4
          %s218 = int_to_ptr.hbm [resolvable:$true] %s217
          %s219 = sshll.u32 [#allocation5], 4
          %s220 = int_to_ptr.vmem [resolvable:$true] %s219
          %225 = dma.hbm_to_vmem [thread:$0]  %s218, 2048, %s220, [#allocation6], 128, 128, 8
        $region32: #{tpu_custom_call.1} parent=11 // pred_fallthru
          _
      $region12: #{tpu_custom_call.1} parent=5 // pred_fallthru
        _
      %p226 = scmp.lt.s32.totalorder %s17, 2
      // Predicated region
      $region33: #{tpu_custom_call.1} parent=5 // pred_check
        %p227 = pneg %p226
      $region34: #{tpu_custom_call.1} parent=5 // pred_check_branch
        %229 = sbr.rel (%p227) target = $region36
      $region35: #{tpu_custom_call.1} parent=5 // pred_region
        // Predicated region
        $region37: #{tpu_custom_call.1} parent=35 // pred_check
          %p230 = pneg %p37
        $region38: #{tpu_custom_call.1} parent=35 // pred_check_branch
          %232 = sbr.rel (%p230) target = $region40
        $region39: #{tpu_custom_call.1} parent=35 // pred_region
          %s233 = smul.u32 4, %s17
          %p234 = scmp.lt.s32.totalorder %s233, 7
          %s235 = scalar_select %p234, %s233, 7
          %s236 = smul.addr %s235, 8
          %s237 = scalar_lea.vmem %s0, %s236
          %s238 = smul.u32 4, %s17
        $region40: #{tpu_custom_call.1} parent=35 // pred_fallthru
          _
      $region36: #{tpu_custom_call.1} parent=5 // pred_fallthru
        _
      %p239 = scmp.le.s32.totalorder 1, %s17
      %p240 = scmp.lt.s32.totalorder %s17, 3
      %p241 = pnand %p239, %p240
      %p242 = pneg %p241
      // Predicated region
      $region41: #{tpu_custom_call.1} parent=5 // pred_check
        _
      $region42: #{tpu_custom_call.1} parent=5 // pred_check_branch
        %244 = sbr.rel (%p241) target = $region44
      $region43: #{tpu_custom_call.1} parent=5 // pred_region
        %s245 = ssub.s32 %s17, 1
        // Predicated region
        $region45: #{tpu_custom_call.1} parent=43 // pred_check
          %p246 = pneg %p106
        $region46: #{tpu_custom_call.1} parent=43 // pred_check_branch
          %248 = sbr.rel (%p246) target = $region48
        $region47: #{tpu_custom_call.1} parent=43 // pred_region
          %250 = dma.done [#allocation3], 6144
        $region48: #{tpu_custom_call.1} parent=43 // pred_fallthru
          _
        // Predicated region
        $region49: #{tpu_custom_call.1} parent=43 // pred_check
          %p251 = pneg %p148
        $region50: #{tpu_custom_call.1} parent=43 // pred_check_branch
          %253 = sbr.rel (%p251) target = $region52
        $region51: #{tpu_custom_call.1} parent=43 // pred_region
          %255 = dma.done [#allocation6], 2048
        $region52: #{tpu_custom_call.1} parent=43 // pred_fallthru
          _
        %s256 = smul.u32 4, %s22
        %p257 = scmp.lt.s32.totalorder %s256, 7
        %s258 = scalar_select %p257, %s256, 7
        %s259 = smul.addr %s258, 8
        %s260 = scalar_lea.vmem %s0, %s259
        %p261 = pneg %p43
        %p262 = pneg %p40
        %p263 = pneg %p64
        %p264 = pneg %p61
        %p265 = pneg %p85
        %p266 = pneg %p82
        %p267 = pneg %p106
        %p268 = pneg %p103
        %p269 = pneg %p127
        %p270 = pneg %p124
        %p271 = pneg %p148
        %p272 = pneg %p145
        %p273 = pneg %p174
        %p274 = pneg %p171
        %s275 = sand.u32 %s161, 1
        %s276 = scalar_lea.sflag [#allocation4], %s275
        %s277 = sand.u32 %s161, 1
        %s278 = smul.addr %s277, 32
        %s279 = scalar_lea.vmem [#allocation7], %s278
        %s280 = smul.u32 4, %s22
        %p281 = scmp.lt.s32.totalorder %s280, 7
        %s282 = scalar_select %p281, %s280, 7
        %s283 = smul.addr %s282, 8
        %s284 = scalar_lea.vmem %s0, %s283
        %s285 = smul.u32 4, %s22
        %s286 = smul.u32 4, %s22
        %v287 = vld [vmem:[%s284] sm:$0xff]
        %v288 = vld [vmem:[%s284 + $0x8] sm:$0xff]
        %v289 = vld [vmem:[%s284 + $0x10] sm:$0xff]
        %v290 = vld [vmem:[%s284 + $0x18] sm:$0xff]
        %v291 = vld [vmem:[%s1] sm:$0xff]
        %v292 = vld [vmem:[%s1 + $0x8] sm:$0xff]
        %v293 = vld [vmem:[%s1 + $0x10] sm:$0xff]
        %v294 = vld [vmem:[%s1 + $0x18] sm:$0xff]
        %v295 = vld [vmem:[%s2] sm:$0x1]
        %v297 = vperm.slane %v295, 0
        %vm299 = vcmask 261120
        %v301 = vsel %vm299, %v287, 0
        %v304 = vsel %vm299, %v288, 0
        %v307 = vsel %vm299, %v289, 0
        %v310 = vsel %vm299, %v290, 0
        %312 = vmatpush.msra.mxu0 0.0
        %313 = vmatpush.msra.mxu0 0.0
        %314 = vmatpush.msra.mxu0 0.0
        %315 = vmatpush.msra.mxu0 0.0
        %316 = vmatpush.msra.mxu0 0.0
        %317 = vmatpush.msra.mxu0 0.0
        %318 = vmatpush.msra.mxu0 0.0
        %319 = vmatpush.msra.mxu0 0.0
        %320 = vmatpush.msra.mxu0 0.0
        %321 = vmatpush.msra.mxu0 0.0
        %322 = vmatpush.msra.mxu0 0.0
        %323 = vmatpush.msra.mxu0 0.0
        %324 = vmatpush.msra.mxu0 %v294
        %325 = vmatpush.msra.mxu0 %v293
        %326 = vmatpush.msra.mxu0 %v292
        %327 = vmatpush.msra.mxu0 %v291
        %328 = vmatmul.f32.gmra.mxu0 %v301
        %v329 = vpop.f32.mrf.mxu0
        %v330 = vadd.f32 %v297, %v329
        %331 = vmatmul.f32.gmra.mxu0 %v304
        %v332 = vpop.f32.mrf.mxu0
        %v333 = vadd.f32 %v297, %v332
        %334 = vmatmul.f32.gmra.mxu0 %v307
        %v335 = vpop.f32.mrf.mxu0
        %v336 = vadd.f32 %v297, %v335
        %337 = vmatmul.f32.gmra.mxu0 %v310
        %v338 = vpop.f32.mrf.mxu0
        %v339 = vadd.f32 %v297, %v338
        %340 = vdwg.mxu0
        %v341 = vxor.u32 %v330, 2147483648
        %v342 = vxor.u32 %v333, 2147483648
        %v343 = vxor.u32 %v336, 2147483648
        %v344 = vxor.u32 %v339, 2147483648
        %v345 = vmul.f32 %v341, 1.442695
        %v346 = vpow.pop %v345
        %v347 = vmul.f32 %v342, 1.442695
        %v348 = vpow.pop %v347
        %v349 = vmul.f32 %v343, 1.442695
        %v350 = vpow.pop %v349
        %v351 = vmul.f32 %v344, 1.442695
        %v352 = vpow.pop %v351
        %v353 = vadd.f32 %v346, 1.0
        %v354 = vadd.f32 %v348, 1.0
        %v355 = vadd.f32 %v350, 1.0
        %v356 = vadd.f32 %v352, 1.0
        %v357 = vrcp.pop %v353
        %v358 = vmul.f32 %v353, %v357
        %v359 = vsub.f32 1.0, %v358
        %v360 = vmul.f32 %v357, %v359
        %v361 = vadd.f32 %v357, %v360
        %vm362 = vweird.f32 %v353
        %vm363 = vweird.f32 %v357
        %vm364 = vmor %vm362, %vm363
        %v365 = vsel %vm364, %v357, %v361
        %v366 = vand.u32 2147483647, %v353
        %vm367 = vcmp.eq.f32.partialorder %v366, 8.507059e+37
        %v368 = vand.u32 %v353, 2147483648
        %v369 = vor.u32 1.1754944e-38, %v368
        %v370 = vsel %vm367, %v369, %v365
        %v371 = vmul.f32 1.0, %v370
        %v372 = vrcp.pop %v354
        %v373 = vmul.f32 %v354, %v372
        %v374 = vsub.f32 1.0, %v373
        %v375 = vmul.f32 %v372, %v374
        %v376 = vadd.f32 %v372, %v375
        %vm377 = vweird.f32 %v354
        %vm378 = vweird.f32 %v372
        %vm379 = vmor %vm377, %vm378
        %v380 = vsel %vm379, %v372, %v376
        %v381 = vand.u32 2147483647, %v354
        %vm382 = vcmp.eq.f32.partialorder %v381, 8.507059e+37
        %v383 = vand.u32 %v354, 2147483648
        %v384 = vor.u32 1.1754944e-38, %v383
        %v385 = vsel %vm382, %v384, %v380
        %v386 = vmul.f32 1.0, %v385
        %v387 = vrcp.pop %v355
        %v388 = vmul.f32 %v355, %v387
        %v389 = vsub.f32 1.0, %v388
        %v390 = vmul.f32 %v387, %v389
        %v391 = vadd.f32 %v387, %v390
        %vm392 = vweird.f32 %v355
        %vm393 = vweird.f32 %v387
        %vm394 = vmor %vm392, %vm393
        %v395 = vsel %vm394, %v387, %v391
        %v396 = vand.u32 2147483647, %v355
        %vm397 = vcmp.eq.f32.partialorder %v396, 8.507059e+37
        %v398 = vand.u32 %v355, 2147483648
        %v399 = vor.u32 1.1754944e-38, %v398
        %v400 = vsel %vm397, %v399, %v395
        %v401 = vmul.f32 1.0, %v400
        %v402 = vrcp.pop %v356
        %v403 = vmul.f32 %v356, %v402
        %v404 = vsub.f32 1.0, %v403
        %v405 = vmul.f32 %v402, %v404
        %v406 = vadd.f32 %v402, %v405
        %vm407 = vweird.f32 %v356
        %vm408 = vweird.f32 %v402
        %vm409 = vmor %vm407, %vm408
        %v410 = vsel %vm409, %v402, %v406
        %v411 = vand.u32 2147483647, %v356
        %vm412 = vcmp.eq.f32.partialorder %v411, 8.507059e+37
        %v413 = vand.u32 %v356, 2147483648
        %v414 = vor.u32 1.1754944e-38, %v413
        %v415 = vsel %vm412, %v414, %v410
        %v416 = vmul.f32 1.0, %v415
        %v417 = vld [vmem:[#allocation2] sm:$0xff]
        %v418 = vld [vmem:[#allocation2 + $0x8] sm:$0xff]
        %v419 = vld [vmem:[#allocation2 + $0x10] sm:$0xff]
        %v420 = vld [vmem:[#allocation2 + $0x18] sm:$0xff]
        %v421 = vld [vmem:[#allocation2 + $0x20] sm:$0xff]
        %v422 = vld [vmem:[#allocation2 + $0x28] sm:$0xff]
        %v423 = vld [vmem:[#allocation2 + $0x30] sm:$0xff]
        %v424 = vld [vmem:[#allocation2 + $0x38] sm:$0xff]
        %v425 = vld [vmem:[#allocation2 + $0x40] sm:$0xff]
        %v426 = vld [vmem:[#allocation2 + $0x48] sm:$0xff]
        %v427 = vld [vmem:[#allocation2 + $0x50] sm:$0xff]
        %v428 = vld [vmem:[#allocation2 + $0x58] sm:$0xff]
        %v429 = vld [vmem:[#allocation2 + $0x60] sm:$0xff]
        %v430 = vld [vmem:[#allocation2 + $0x68] sm:$0xff]
        %v431 = vld [vmem:[#allocation2 + $0x70] sm:$0xff]
        %v432 = vld [vmem:[#allocation2 + $0x78] sm:$0xff]
        %v433 = vld [vmem:[#allocation2 + $0x80] sm:$0xff]
        %v434 = vld [vmem:[#allocation2 + $0x88] sm:$0xff]
        %v435 = vld [vmem:[#allocation2 + $0x90] sm:$0xff]
        %v436 = vld [vmem:[#allocation2 + $0x98] sm:$0xff]
        %v437 = vld [vmem:[#allocation2 + $0xa0] sm:$0xff]
        %v438 = vld [vmem:[#allocation2 + $0xa8] sm:$0xff]
        %v439 = vld [vmem:[#allocation2 + $0xb0] sm:$0xff]
        %v440 = vld [vmem:[#allocation2 + $0xb8] sm:$0xff]
        %v441 = vld [vmem:[#allocation2 + $0xc0] sm:$0xff]
        %v442 = vld [vmem:[#allocation2 + $0xc8] sm:$0xff]
        %v443 = vld [vmem:[#allocation2 + $0xd0] sm:$0xff]
        %v444 = vld [vmem:[#allocation2 + $0xd8] sm:$0xff]
        %v445 = vld [vmem:[#allocation2 + $0xe0] sm:$0xff]
        %v446 = vld [vmem:[#allocation2 + $0xe8] sm:$0xff]
        %v447 = vld [vmem:[#allocation2 + $0xf0] sm:$0xff]
        %v448 = vld [vmem:[#allocation2 + $0xf8] sm:$0xff]
        %v449 = vld [vmem:[#allocation2 + $0x100] sm:$0xff]
        %v450 = vld [vmem:[#allocation2 + $0x108] sm:$0xff]
        %v451 = vld [vmem:[#allocation2 + $0x110] sm:$0xff]
        %v452 = vld [vmem:[#allocation2 + $0x118] sm:$0xff]
        %v453 = vld [vmem:[#allocation2 + $0x120] sm:$0xff]
        %v454 = vld [vmem:[#allocation2 + $0x128] sm:$0xff]
        %v455 = vld [vmem:[#allocation2 + $0x130] sm:$0xff]
        %v456 = vld [vmem:[#allocation2 + $0x138] sm:$0xff]
        %v457 = vld [vmem:[#allocation2 + $0x140] sm:$0xff]
        %v458 = vld [vmem:[#allocation2 + $0x148] sm:$0xff]
        %v459 = vld [vmem:[#allocation2 + $0x150] sm:$0xff]
        %v460 = vld [vmem:[#allocation2 + $0x158] sm:$0xff]
        %v461 = vld [vmem:[#allocation2 + $0x160] sm:$0xff]
        %v462 = vld [vmem:[#allocation2 + $0x168] sm:$0xff]
        %v463 = vld [vmem:[#allocation2 + $0x170] sm:$0xff]
        %v464 = vld [vmem:[#allocation2 + $0x178] sm:$0xff]
        %465 = vmatpush.msra.mxu0 %v462
        %466 = vmatpush.msra.mxu0 %v459
        %467 = vmatpush.msra.mxu0 %v456
        %468 = vmatpush.msra.mxu0 %v453
        %469 = vmatpush.msra.mxu0 %v450
        %470 = vmatpush.msra.mxu0 %v447
        %471 = vmatpush.msra.mxu0 %v444
        %472 = vmatpush.msra.mxu0 %v441
        %473 = vmatpush.msra.mxu0 %v438
        %474 = vmatpush.msra.mxu0 %v435
        %475 = vmatpush.msra.mxu0 %v432
        %476 = vmatpush.msra.mxu0 %v429
        %477 = vmatpush.msra.mxu0 %v426
        %478 = vmatpush.msra.mxu0 %v423
        %479 = vmatpush.msra.mxu0 %v420
        %480 = vmatpush.msra.mxu0 %v417
        %481 = vmatmul.f32.gmra.mxu0 %v371
        %v482 = vpop.f32.mrf.mxu0
        %v483 = vadd.f32 0.0, %v482
        %484 = vmatmul.f32.gmra.mxu0 %v386
        %v485 = vpop.f32.mrf.mxu0
        %v486 = vadd.f32 0.0, %v485
        %487 = vmatmul.f32.gmra.mxu0 %v401
        %v488 = vpop.f32.mrf.mxu0
        %v489 = vadd.f32 0.0, %v488
        %490 = vmatmul.f32.gmra.mxu0 %v416
        %v491 = vpop.f32.mrf.mxu0
        %v492 = vadd.f32 0.0, %v491
        %493 = vdwg.mxu0
        %494 = vmatpush.msra.mxu0 %v463
        %495 = vmatpush.msra.mxu0 %v460
        %496 = vmatpush.msra.mxu0 %v457
        %497 = vmatpush.msra.mxu0 %v454
        %498 = vmatpush.msra.mxu0 %v451
        %499 = vmatpush.msra.mxu0 %v448
        %500 = vmatpush.msra.mxu0 %v445
        %501 = vmatpush.msra.mxu0 %v442
        %502 = vmatpush.msra.mxu0 %v439
        %503 = vmatpush.msra.mxu0 %v436
        %504 = vmatpush.msra.mxu0 %v433
        %505 = vmatpush.msra.mxu0 %v430
        %506 = vmatpush.msra.mxu0 %v427
        %507 = vmatpush.msra.mxu0 %v424
        %508 = vmatpush.msra.mxu0 %v421
        %509 = vmatpush.msra.mxu0 %v418
        %510 = vmatmul.f32.gmra.mxu0 %v371
        %v511 = vpop.f32.mrf.mxu0
        %v512 = vadd.f32 0.0, %v511
        %513 = vmatmul.f32.gmra.mxu0 %v386
        %v514 = vpop.f32.mrf.mxu0
        %v515 = vadd.f32 0.0, %v514
        %516 = vmatmul.f32.gmra.mxu0 %v401
        %v517 = vpop.f32.mrf.mxu0
        %v518 = vadd.f32 0.0, %v517
        %519 = vmatmul.f32.gmra.mxu0 %v416
        %v520 = vpop.f32.mrf.mxu0
        %v521 = vadd.f32 0.0, %v520
        %522 = vdwg.mxu0
        %523 = vmatpush.msra.mxu0 %v464
        %524 = vmatpush.msra.mxu0 %v461
        %525 = vmatpush.msra.mxu0 %v458
        %526 = vmatpush.msra.mxu0 %v455
        %527 = vmatpush.msra.mxu0 %v452
        %528 = vmatpush.msra.mxu0 %v449
        %529 = vmatpush.msra.mxu0 %v446
        %530 = vmatpush.msra.mxu0 %v443
        %531 = vmatpush.msra.mxu0 %v440
        %532 = vmatpush.msra.mxu0 %v437
        %533 = vmatpush.msra.mxu0 %v434
        %534 = vmatpush.msra.mxu0 %v431
        %535 = vmatpush.msra.mxu0 %v428
        %536 = vmatpush.msra.mxu0 %v425
        %537 = vmatpush.msra.mxu0 %v422
        %538 = vmatpush.msra.mxu0 %v419
        %539 = vmatmul.f32.gmra.mxu0 %v371
        %v540 = vpop.f32.mrf.mxu0
        %v541 = vadd.f32 0.0, %v540
        %542 = vmatmul.f32.gmra.mxu0 %v386
        %v543 = vpop.f32.mrf.mxu0
        %v544 = vadd.f32 0.0, %v543
        %545 = vmatmul.f32.gmra.mxu0 %v401
        %v546 = vpop.f32.mrf.mxu0
        %v547 = vadd.f32 0.0, %v546
        %548 = vmatmul.f32.gmra.mxu0 %v416
        %v549 = vpop.f32.mrf.mxu0
        %v550 = vadd.f32 0.0, %v549
        %551 = vdwg.mxu0
        %v552 = vld [vmem:[%s4] sm:$0x7]
        %vm553 = vcmp.gt.f32.partialorder %v552, 0.5
        %vm554 = vcmp.ge.f32.partialorder %v483, 0.5
        %vm555 = vcmp.ge.f32.partialorder %v486, 0.5
        %vm556 = vcmp.ge.f32.partialorder %v489, 0.5
        %vm557 = vcmp.ge.f32.partialorder %v492, 0.5
        %v558 = vsub.f32 1.0, %v483
        %v559 = vsub.f32 1.0, %v486
        %v560 = vsub.f32 1.0, %v489
        %v561 = vsub.f32 1.0, %v492
        %v562 = vsel %vm553, 1, 0
        %v563 = vperm.slane %v562, 0
        %vm564 = vcmp.eq.s32.totalorder %v563, 1
        %v565 = vsel %vm564, %v483, %v558
        %v566 = vsel %vm564, %v486, %v559
        %v567 = vsel %vm564, %v489, %v560
        %v568 = vsel %vm564, %v492, %v561
        %vm569 = vmxor %vm554, %vm564
        %vm570 = vmxor %vm555, %vm564
        %vm571 = vmxor %vm556, %vm564
        %vm572 = vmxor %vm557, %vm564
        %vm573 = vmxor %vm569, 1
        %vm574 = vmxor %vm570, 1
        %vm575 = vmxor %vm571, 1
        %vm576 = vmxor %vm572, 1
        %v577 = vsel %vm573, %v565, 0.0
        %v578 = vsel %vm574, %v566, 0.0
        %v579 = vsel %vm575, %v567, 0.0
        %v580 = vsel %vm576, %v568, 0.0
        %v582 = vrot.slane %v552, 1
        %vm584 = vcmp.gt.f32.partialorder %v582, 0.5
        %vm585 = vcmp.ge.f32.partialorder %v512, 0.5
        %vm586 = vcmp.ge.f32.partialorder %v515, 0.5
        %vm587 = vcmp.ge.f32.partialorder %v518, 0.5
        %vm588 = vcmp.ge.f32.partialorder %v521, 0.5
        %v589 = vsub.f32 1.0, %v512
        %v590 = vsub.f32 1.0, %v515
        %v591 = vsub.f32 1.0, %v518
        %v592 = vsub.f32 1.0, %v521
        %v593 = vsel %vm584, 1, 0
        %v594 = vperm.slane %v593, 0
        %vm595 = vcmp.eq.s32.totalorder %v594, 1
        %v596 = vsel %vm595, %v512, %v589
        %v597 = vsel %vm595, %v515, %v590
        %v598 = vsel %vm595, %v518, %v591
        %v599 = vsel %vm595, %v521, %v592
        %vm600 = vmxor %vm585, %vm595
        %vm601 = vmxor %vm586, %vm595
        %vm602 = vmxor %vm587, %vm595
        %vm603 = vmxor %vm588, %vm595
        %vm604 = vmxor %vm600, 1
        %vm605 = vmxor %vm601, 1
        %vm606 = vmxor %vm602, 1
        %vm607 = vmxor %vm603, 1
        %v608 = vsel %vm604, %v596, 0.0
        %v609 = vsel %vm605, %v597, 0.0
        %v610 = vsel %vm606, %v598, 0.0
        %v611 = vsel %vm607, %v599, 0.0
        %v612 = vmul.f32 %v577, %v608
        %v613 = vmul.f32 %v578, %v609
        %v614 = vmul.f32 %v579, %v610
        %v615 = vmul.f32 %v580, %v611
        %v616 = vrot.slane %v552, 2
        %vm618 = vcmp.gt.f32.partialorder %v616, 0.5
        %vm619 = vcmp.ge.f32.partialorder %v541, 0.5
        %vm620 = vcmp.ge.f32.partialorder %v544, 0.5
        %vm621 = vcmp.ge.f32.partialorder %v547, 0.5
        %vm622 = vcmp.ge.f32.partialorder %v550, 0.5
        %v623 = vsub.f32 1.0, %v541
        %v624 = vsub.f32 1.0, %v544
        %v625 = vsub.f32 1.0, %v547
        %v626 = vsub.f32 1.0, %v550
        %v627 = vsel %vm618, 1, 0
        %v628 = vperm.slane %v627, 0
        %vm629 = vcmp.eq.s32.totalorder %v628, 1
        %v630 = vsel %vm629, %v541, %v623
        %v631 = vsel %vm629, %v544, %v624
        %v632 = vsel %vm629, %v547, %v625
        %v633 = vsel %vm629, %v550, %v626
        %vm634 = vmxor %vm619, %vm629
        %vm635 = vmxor %vm620, %vm629
        %vm636 = vmxor %vm621, %vm629
        %vm637 = vmxor %vm622, %vm629
        %vm638 = vmxor %vm634, 1
        %vm639 = vmxor %vm635, 1
        %vm640 = vmxor %vm636, 1
        %vm641 = vmxor %vm637, 1
        %v642 = vsel %vm638, %v630, 0.0
        %v643 = vsel %vm639, %v631, 0.0
        %v644 = vsel %vm640, %v632, 0.0
        %v645 = vsel %vm641, %v633, 0.0
        %v646 = vmul.f32 %v612, %v642
        %v647 = vmul.f32 %v613, %v643
        %v648 = vmul.f32 %v614, %v644
        %v649 = vmul.f32 %v615, %v645
        %v650 = vld [vmem:[#allocation5] sm:$0xff]
        %v651 = vld [vmem:[#allocation5 + $0x8] sm:$0xff]
        %v652 = vld [vmem:[#allocation5 + $0x10] sm:$0xff]
        %v653 = vld [vmem:[#allocation5 + $0x18] sm:$0xff]
        %v654 = vld [vmem:[#allocation5 + $0x20] sm:$0xff]
        %v655 = vld [vmem:[#allocation5 + $0x28] sm:$0xff]
        %v656 = vld [vmem:[#allocation5 + $0x30] sm:$0xff]
        %v657 = vld [vmem:[#allocation5 + $0x38] sm:$0xff]
        %v658 = vld [vmem:[#allocation5 + $0x40] sm:$0xff]
        %v659 = vld [vmem:[#allocation5 + $0x48] sm:$0xff]
        %v660 = vld [vmem:[#allocation5 + $0x50] sm:$0xff]
        %v661 = vld [vmem:[#allocation5 + $0x58] sm:$0xff]
        %v662 = vld [vmem:[#allocation5 + $0x60] sm:$0xff]
        %v663 = vld [vmem:[#allocation5 + $0x68] sm:$0xff]
        %v664 = vld [vmem:[#allocation5 + $0x70] sm:$0xff]
        %v665 = vld [vmem:[#allocation5 + $0x78] sm:$0xff]
        %666 = vmatpush.msra.mxu0 %v665
        %667 = vmatpush.msra.mxu0 %v664
        %668 = vmatpush.msra.mxu0 %v663
        %669 = vmatpush.msra.mxu0 %v662
        %670 = vmatpush.msra.mxu0 %v661
        %671 = vmatpush.msra.mxu0 %v660
        %672 = vmatpush.msra.mxu0 %v659
        %673 = vmatpush.msra.mxu0 %v658
        %674 = vmatpush.msra.mxu0 %v657
        %675 = vmatpush.msra.mxu0 %v656
        %676 = vmatpush.msra.mxu0 %v655
        %677 = vmatpush.msra.mxu0 %v654
        %678 = vmatpush.msra.mxu0 %v653
        %679 = vmatpush.msra.mxu0 %v652
        %680 = vmatpush.msra.mxu0 %v651
        %681 = vmatpush.msra.mxu0 %v650
        %682 = vmatmul.f32.gmra.mxu0 %v646
        %v683 = vpop.f32.mrf.mxu0
        %v684 = vadd.f32 0.0, %v683
        %685 = vmatmul.f32.gmra.mxu0 %v647
        %v686 = vpop.f32.mrf.mxu0
        %v687 = vadd.f32 0.0, %v686
        %688 = vmatmul.f32.gmra.mxu0 %v648
        %v689 = vpop.f32.mrf.mxu0
        %v690 = vadd.f32 0.0, %v689
        %691 = vmatmul.f32.gmra.mxu0 %v649
        %v692 = vpop.f32.mrf.mxu0
        %v693 = vadd.f32 0.0, %v692
        %694 = vdwg.mxu0
        %695 = vst [vmem:[%s279] sm:$0xff] %v684
        %696 = vst [vmem:[%s279 + $0x8] sm:$0xff] %v687
        %697 = vst [vmem:[%s279 + $0x10] sm:$0xff] %v690
        %698 = vst [vmem:[%s279 + $0x18] sm:$0xff] %v693
        %s699 = sand.u32 %s161, 1
        %s700 = scalar_lea.sflag [#allocation4], %s699
        %s701 = sand.u32 %s161, 1
        %s702 = smul.addr %s701, 32
        %s703 = scalar_lea.vmem [#allocation7], %s702
        // Predicated region
        $region53: #{tpu_custom_call.1} parent=43 // pred_check
          %p704 = pneg %p171
        $region54: #{tpu_custom_call.1} parent=43 // pred_check_branch
          %706 = sbr.rel (%p704) target = $region56
        $region55: #{tpu_custom_call.1} parent=43 // pred_region
          %s707 = smul.u32 4, %s22
          %709 = vsyncadd %s700, 0
          %s710 = smul.addr %s707, 8
          %s711 = scalar_lea.hbm %s6, %s710
          %s712 = sshll.u32 %s703, 4
          %s713 = int_to_ptr.vmem [resolvable:$true] %s712
          %s714 = sshll.u32 %s711, 4
          %s715 = int_to_ptr.hbm [resolvable:$true] %s714
          %720 = dma.vmem_to_hbm [thread:$0]  %s713, 512, %s715, %s700, 128, 128, 8
        $region56: #{tpu_custom_call.1} parent=43 // pred_fallthru
          _
      $region44: #{tpu_custom_call.1} parent=5 // pred_fallthru
        _
      %p721 = scmp.le.s32.totalorder 2, %s17
      // Predicated region
      $region57: #{tpu_custom_call.1} parent=5 // pred_check
        %p722 = pneg %p721
      $region58: #{tpu_custom_call.1} parent=5 // pred_check_branch
        %724 = sbr.rel (%p722) target = $region60
      $region59: #{tpu_custom_call.1} parent=5 // pred_region
        %s725 = ssub.s32 %s17, 2
        // Predicated region
        $region61: #{tpu_custom_call.1} parent=59 // pred_check
          %p726 = pneg %p177
        $region62: #{tpu_custom_call.1} parent=59 // pred_check_branch
          %728 = sbr.rel (%p726) target = $region64
        $region63: #{tpu_custom_call.1} parent=59 // pred_region
          %s729 = sand.u32 %s162, 1
          %s730 = scalar_lea.sflag [#allocation4], %s729
          %s731 = sand.u32 %s162, 1
          %s732 = smul.addr %s731, 32
          %s733 = scalar_lea.vmem [#allocation7], %s732
          %735 = dma.done %s730, 512
        $region64: #{tpu_custom_call.1} parent=59 // pred_fallthru
          _
      $region60: #{tpu_custom_call.1} parent=5 // pred_fallthru
        _
    $region6: #{tpu_custom_call.1} parent=1 // loop_footer
      %s21 = sadd.s32 1, %s17
    $region7: #{tpu_custom_call.1} parent=1 // loop_footer_branch
      %16 = sbr.rel target = $region3
    $region8: #{tpu_custom_call.1} parent=1 // loop_exit
      _
    %736 = vsyncpa [#allocation3], 1
    %s737 = scalar_lea.sflag [#allocation3], 1
    %738 = vsyncpa %s737, 1
    %739 = vsyncpa [#allocation6], 1
    %740 = vsyncpa [#allocation4], 1
    %s741 = scalar_lea.sflag [#allocation4], 1
    %742 = vsyncpa %s741, 1

</llo_original>
